<compile_context>
chip_gen: v5e
topology: v5e:2x2
jax: 0.10.0
libtpu: 0.0.40
codegen_flags: <defaults>
</compile_context>

<pallas_src>
import jax
import jax.numpy as jnp
from jax import lax
from jax.experimental import pallas as pl
from jax.experimental.pallas import tpu as pltpu  # noqa: F401  (kept for TPU-specific extensions)


# -----------------------------------------------------------------------------
# One-time parameter preparation (hoisted out of the forward path)
# -----------------------------------------------------------------------------
def _conv_out_len(L, k, stride, padding):
    return (L + 2 * padding - (k - 1) - 1) // stride + 1


def _pool_matrix(L_conv, L_pool):
    # p[j, c] = 0.5 iff j // 2 == c (drops the last column when L_conv is odd,
    # matching torch AvgPool1d floor behaviour).
    r = jnp.arange(L_conv)[:, None]
    c = jnp.arange(L_pool)[None, :]
    return (((r // 2) == c) & (r < 2 * L_pool)).astype(jnp.float32) * 0.5


def _shift_matrix(L_in, L_out, tap, stride, padding):
    # Only used for the stride != 1 fallback path.
    j = jnp.arange(L_in)[:, None]
    l = jnp.arange(L_out)[None, :]
    src = l * stride + tap - padding
    return ((j == src) & (src >= 0) & (src < L_in)).astype(jnp.float32)


def _pack_columns(pieces):
    """Pack a dict of small 2-D f32 arrays into one slab along the lane dim.

    Returns (slab, layout) where layout[name] = (rows, col_start, col_end),
    all static Python ints (sliced statically inside the kernel).
    """
    max_rows = max(int(p.shape[0]) for p in pieces.values())
    cols, layout, c = [], {}, 0
    for name, p in pieces.items():
        p = p.astype(jnp.float32)
        r, w = int(p.shape[0]), int(p.shape[1])
        if r < max_rows:
            p = jnp.concatenate([p, jnp.zeros((max_rows - r, w), jnp.float32)], axis=0)
        cols.append(p)
        layout[name] = (r, c, c + w)
        c += w
    return jnp.concatenate(cols, axis=1), layout


def prepare_params(params, *, batch, kernel_size, stride, padding,
                   input_seq, num_classes):
    """Precompute all constant matrices once (outside the forward path)."""
    B, K = batch, kernel_size
    w1, b1 = params["w1"], params["b1"]          # (32, C_in, K), (32,)
    w2, b2 = params["w2"], params["b2"]          # (C2, 32, K),  (C2,)
    wfc, bfc = params["wfc"], params["bfc"]      # (N, F), (N,)
    C1, Cin = int(w1.shape[0]), int(w1.shape[1])
    C2 = int(w2.shape[0])
    N = num_classes
    eyeB = jnp.eye(B, dtype=jnp.float32)

    L1_in = input_seq
    L1_conv = _conv_out_len(L1_in, K, stride, padding)
    L1_pool = L1_conv // 2
    L2_in = L1_pool
    L2_conv = _conv_out_len(L2_in, K, stride, padding)
    L2_pool = L2_conv // 2
    assert wfc.shape == (N, C2 * L2_pool), (wfc.shape, (N, C2 * L2_pool))

    # Layer-1 wide weight: output rows (o, b) channel-major; columns (k, b', i)
    # matching the batch-major input rows (b'*Cin + i) stacked per tap.
    w1_wide = jnp.concatenate(
        [jnp.einsum("oi,bc->obci", w1[:, :, k].astype(jnp.float32), eyeB
                    ).reshape(C1 * B, B * Cin) for k in range(K)], axis=1)
    # Layer-2 wide weight: rows (c2, b); columns (k, o, b') matching the
    # channel-major layer-1 output rows stacked per tap.
    w2_wide = jnp.concatenate(
        [jnp.kron(w2[:, :, k].astype(jnp.float32), eyeB) for k in range(K)], axis=1)
    b1_cm = jnp.repeat(b1.astype(jnp.float32), B).reshape(C1 * B, 1)
    b2_cm = jnp.repeat(b2.astype(jnp.float32), B).reshape(C2 * B, 1)

    p1 = _pool_matrix(L1_conv, L1_pool)                       # (L1_conv, L1_pool)

    # Fold AvgPool-2 into the FC weight (linear ∘ pool = one matrix).
    p2 = _pool_matrix(L2_conv, L2_pool)                       # (L2_conv, L2_pool)
    wfc3 = wfc.astype(jnp.float32).reshape(N, C2, L2_pool)
    wfold = jnp.einsum("ncl,jl->ncj", wfc3, p2)               # (N, C2, L2_conv)
    wfcT = jnp.transpose(wfold, (1, 2, 0)).reshape(C2 * L2_conv, N)
    bfc2 = bfc.astype(jnp.float32).reshape(1, N)

    pieces = {"w1": w1_wide, "b1": b1_cm, "p1": p1,
              "w2": w2_wide, "b2": b2_cm, "wfcT": wfcT, "bfc": bfc2}
    if stride != 1:
        # TODO(synk): stride>1 shifted views need a strided lane gather; keep a
        # per-tap shift-matrix fallback (still a single wide weight matmul).
        pieces["sh1"] = jnp.concatenate(
            [_shift_matrix(L1_in, L1_conv, k, stride, padding) for k in range(K)], axis=1)
        pieces["sh2"] = jnp.concatenate(
            [_shift_matrix(L2_in, L2_conv, k, stride, padding) for k in range(K)], axis=1)

    slab, layout = _pack_columns(pieces)
    dims = dict(B=B, C2=C2, K=K, stride=stride, padding=padding,
                L1_conv=L1_conv, L2_conv=L2_conv, N=N)
    return dict(slab=slab, layout=layout, dims=dims)


# -----------------------------------------------------------------------------
# Fused kernel (4 MXU dispatches total)
# -----------------------------------------------------------------------------
def _make_kernel(layout, dims):
    B, C2, K = dims["B"], dims["C2"], dims["K"]
    stride, padding = dims["stride"], dims["padding"]
    L1_conv, L2_conv = dims["L1_conv"], dims["L2_conv"]
    f32 = jnp.float32

    def shifted(h, d, L_out):
        # z[r, l] = h[r, l + d] if 0 <= l + d < L_in else 0   (stride == 1).
        # Static lane slices + zero concat: pure data movement, no MXU.
        rows, L_in = h.shape
        lead = max(0, -d)
        start = max(0, d)
        take = max(0, min(L_out - lead, L_in - start))
        tail = L_out - lead - take
        parts = []
        if lead:
            parts.append(jnp.zeros((rows, lead), f32))
        if take:
            parts.append(h[:, start:start + take])
        if tail:
            parts.append(jnp.zeros((rows, tail), f32))
        return parts[0] if len(parts) == 1 else jnp.concatenate(parts, axis=1)

    def kernel(x_ref, slab_ref, o_ref):
        def piece(name):
            r, c0, c1 = layout[name]
            return slab_ref[:r, c0:c1]          # static slab slice -> one load

        def conv_relu(h, w_name, b_name, L_conv, sh_name):
            # Stack K shifted views along sublanes, contract once on the MXU.
            if stride == 1:
                blocks = [shifted(h, k - padding, L_conv) for k in range(K)]
            else:
                sh = piece(sh_name)             # (L_in, K*L_conv) fallback
                blocks = [jnp.dot(h, sh[:, k * L_conv:(k + 1) * L_conv],
                                  preferred_element_type=f32) for k in range(K)]
            z = jnp.concatenate(blocks, axis=0)                 # (K*rows, L_conv)
            a = jnp.dot(piece(w_name), z, preferred_element_type=f32)
            return jnp.maximum(a + piece(b_name), 0.0)          # bias + ReLU

        x = x_ref[...]                                          # (B*Cin, L1_in)
        a1 = conv_relu(x, "w1", "b1", L1_conv, "sh1")           # (C1*B, L1_conv)
        h1 = jnp.dot(a1, piece("p1"), preferred_element_type=f32)  # pool1
        a2 = conv_relu(h1, "w2", "b2", L2_conv, "sh2")          # (C2*B, L2_conv)
        # Flatten: channel-major rows -> (B, C2*L2_conv) with C2 contiguous
        # static row slices concatenated along lanes (no matmul, no mask).
        flat = jnp.concatenate([a2[c * B:(c + 1) * B, :] for c in range(C2)],
                               axis=1)                          # (B, C2*L2_conv)
        # AvgPool-2 of layer 2 is already folded into wfcT.
        # Dropout is identity in eval mode.
        o_ref[...] = (jnp.dot(flat, piece("wfcT"), preferred_element_type=f32)
                      + piece("bfc"))                           # (B, N)

    return kernel


# -----------------------------------------------------------------------------
# Forward wrapper — a single, gridless pallas_call (2 input DMAs, 1 output)
# -----------------------------------------------------------------------------
def _full_spec(shape):
    nd = len(shape)
    return pl.BlockSpec(shape, lambda *_, nd=nd: (0,) * nd)


def cnn_1d_forward(prep, x):
    """x: (B, C_in, L) -> logits (B, num_classes)."""
    B, Cin, L = x.shape
    dims = prep["dims"]
    N = dims["N"]
    x2d = x.astype(jnp.float32).reshape(B * Cin, L)   # free row-major view
    kernel = _make_kernel(prep["layout"], dims)
    return pl.pallas_call(
        kernel,
        out_shape=jax.ShapeDtypeStruct((B, N), jnp.float32),
        in_specs=[_full_spec(x2d.shape), _full_spec(prep["slab"].shape)],
        out_specs=_full_spec((B, N)),
    )(x2d, prep["slab"])


# -----------------------------------------------------------------------------
# Pure-JAX reference (for correctness check)
# -----------------------------------------------------------------------------
def reference_forward(params, x, *, stride, padding):
    def conv(xx, w, b):
        y = lax.conv_general_dilated(
            xx, w, (stride,), [(padding, padding)],
            dimension_numbers=("NCH", "OIH", "NCH"))
        return y + b[None, :, None]

    def pool(y):
        Bb, C, L = y.shape
        Lp = L // 2
        return y[:, :, :2 * Lp].reshape(Bb, C, Lp, 2).mean(-1)

    h = pool(jnp.maximum(conv(x, params["w1"], params["b1"]), 0.0))
    h = pool(jnp.maximum(conv(h, params["w2"], params["b2"]), 0.0))
    h = h.reshape(h.shape[0], -1)
    return h @ params["wfc"].T + params["bfc"]


# -----------------------------------------------------------------------------
# Main
# -----------------------------------------------------------------------------
if __name__ == "__main__":
    B = 2
    input_channels = 4
    output_channels = 8
    kernel_size = 3
    stride = 1
    padding = 1
    input_seq = 16
    num_classes = 5

    def calc_len(L, k, s, p):
        return (L + 2 * p - (k - 1) - 1) // s + 1

    seq1 = calc_len(input_seq, kernel_size, stride, padding) // 2
    seq2 = calc_len(seq1, kernel_size, stride, padding) // 2
    fc_in = output_channels * seq2

    key = jax.random.PRNGKey(0)
    k1, k2, k3, k4, k5, k6, kx = jax.random.split(key, 7)
    params = {
        "w1": 0.1 * jax.random.normal(k1, (32, input_channels, kernel_size), jnp.float32),
        "b1": 0.1 * jax.random.normal(k2, (32,), jnp.float32),
        "w2": 0.1 * jax.random.normal(k3, (output_channels, 32, kernel_size), jnp.float32),
        "b2": 0.1 * jax.random.normal(k4, (output_channels,), jnp.float32),
        "wfc": 0.1 * jax.random.normal(k5, (num_classes, fc_in), jnp.float32),
        "bfc": 0.1 * jax.random.normal(k6, (num_classes,), jnp.float32),
    }
    x = jax.random.normal(kx, (B, input_channels, input_seq), jnp.float32)

    # One-time preparation (hoisted out of the forward path).
    prep = prepare_params(params, batch=B, kernel_size=kernel_size, stride=stride,
                          padding=padding, input_seq=input_seq,
                          num_classes=num_classes)

    out = cnn_1d_forward(prep, x)
    out = jax.block_until_ready(out)

    ref = reference_forward(params, x, stride=stride, padding=padding)
    assert out.shape == (B, num_classes), out.shape
    assert jnp.allclose(out, ref, rtol=1e-4, atol=1e-4), (out, ref)

    print("KERNEL_OK")
</pallas_src>

<mosaic_0001>
module attributes {stable_mosaic.version = 11 : i64} {
  func.func @kernel(%arg0: memref<8x16xf32, #tpu.memory_space<vmem>>, %arg1: memref<64x236xf32, #tpu.memory_space<vmem>>, %arg2: memref<2x5xf32, #tpu.memory_space<vmem>>) attributes {dimension_semantics = [], scalar_prefetch = 0 : i64, scratch_operands = 0 : i64, tpu.core_type = #tpu.core_type<tc>} {
    %c0 = arith.constant 0 : index
    %c0_0 = arith.constant 0 : index
    %0 = vector.load %arg0[%c0, %c0_0] : memref<8x16xf32, #tpu.memory_space<vmem>>, vector<8x16xf32>
    %cst = arith.constant 0.000000e+00 : f32
    %1 = vector.broadcast %cst : f32 to vector<8x1xf32>
    %2 = vector.extract_strided_slice %0 {offsets = [0, 0], sizes = [8, 15], strides = [1, 1]} : vector<8x16xf32> to vector<8x15xf32>
    %3 = tpu.concatenate %1, %2 in 1 : vector<8x1xf32>, vector<8x15xf32> -> vector<8x16xf32>
    %4 = vector.extract_strided_slice %0 {offsets = [0, 1], sizes = [8, 15], strides = [1, 1]} : vector<8x16xf32> to vector<8x15xf32>
    %cst_1 = arith.constant 0.000000e+00 : f32
    %5 = vector.broadcast %cst_1 : f32 to vector<8x1xf32>
    %6 = tpu.concatenate %4, %5 in 1 : vector<8x15xf32>, vector<8x1xf32> -> vector<8x16xf32>
    %7 = tpu.concatenate %3, %0, %6 in 0 : vector<8x16xf32>, vector<8x16xf32>, vector<8x16xf32> -> vector<24x16xf32>
    %c0_2 = arith.constant 0 : index
    %c0_3 = arith.constant 0 : index
    %8 = vector.load %arg1[%c0_2, %c0_3] : memref<64x236xf32, #tpu.memory_space<vmem>>, vector<64x24xf32>
    %cst_4 = arith.constant dense<0.000000e+00> : vector<64x16xf32>
    %9 = tpu.matmul %8, %7, %cst_4 {dimension_numbers = #tpu.dot_dimension_numbers<[1], [0], [0], [1], [0, 0, 1, 1], [], []>} : vector<64x24xf32>, vector<24x16xf32>, vector<64x16xf32> -> vector<64x16xf32>
    %c0_5 = arith.constant 0 : index
    %c24 = arith.constant 24 : index
    %10 = vector.load %arg1[%c0_5, %c24] : memref<64x236xf32, #tpu.memory_space<vmem>>, vector<64x1xf32>
    %11 = vector.broadcast %10 : vector<64x1xf32> to vector<64x16xf32>
    %12 = arith.addf %9, %11 : vector<64x16xf32>
    %cst_6 = arith.constant 0.000000e+00 : f32
    %13 = vector.broadcast %cst_6 : f32 to vector<64x16xf32>
    %14 = arith.maximumf %12, %13 : vector<64x16xf32>
    %c0_7 = arith.constant 0 : index
    %c25 = arith.constant 25 : index
    %15 = vector.load %arg1[%c0_7, %c25] : memref<64x236xf32, #tpu.memory_space<vmem>>, vector<16x8xf32>
    %cst_8 = arith.constant dense<0.000000e+00> : vector<64x8xf32>
    %16 = tpu.matmul %14, %15, %cst_8 {dimension_numbers = #tpu.dot_dimension_numbers<[1], [0], [0], [1], [0, 0, 1, 1], [], []>} : vector<64x16xf32>, vector<16x8xf32>, vector<64x8xf32> -> vector<64x8xf32>
    %cst_9 = arith.constant 0.000000e+00 : f32
    %17 = vector.broadcast %cst_9 : f32 to vector<64x1xf32>
    %18 = vector.extract_strided_slice %16 {offsets = [0, 0], sizes = [64, 7], strides = [1, 1]} : vector<64x8xf32> to vector<64x7xf32>
    %19 = tpu.concatenate %17, %18 in 1 : vector<64x1xf32>, vector<64x7xf32> -> vector<64x8xf32>
    %20 = vector.extract_strided_slice %16 {offsets = [0, 1], sizes = [64, 7], strides = [1, 1]} : vector<64x8xf32> to vector<64x7xf32>
    %cst_10 = arith.constant 0.000000e+00 : f32
    %21 = vector.broadcast %cst_10 : f32 to vector<64x1xf32>
    %22 = tpu.concatenate %20, %21 in 1 : vector<64x7xf32>, vector<64x1xf32> -> vector<64x8xf32>
    %23 = tpu.concatenate %19, %16, %22 in 0 : vector<64x8xf32>, vector<64x8xf32>, vector<64x8xf32> -> vector<192x8xf32>
    %c0_11 = arith.constant 0 : index
    %c33 = arith.constant 33 : index
    %24 = vector.load %arg1[%c0_11, %c33] : memref<64x236xf32, #tpu.memory_space<vmem>>, vector<16x192xf32>
    %cst_12 = arith.constant dense<0.000000e+00> : vector<16x8xf32>
    %25 = tpu.matmul %24, %23, %cst_12 {dimension_numbers = #tpu.dot_dimension_numbers<[1], [0], [0], [1], [0, 0, 1, 1], [], []>} : vector<16x192xf32>, vector<192x8xf32>, vector<16x8xf32> -> vector<16x8xf32>
    %c0_13 = arith.constant 0 : index
    %c225 = arith.constant 225 : index
    %26 = vector.load %arg1[%c0_13, %c225] : memref<64x236xf32, #tpu.memory_space<vmem>>, vector<16x1xf32>
    %27 = vector.broadcast %26 : vector<16x1xf32> to vector<16x8xf32>
    %28 = arith.addf %25, %27 : vector<16x8xf32>
    %cst_14 = arith.constant 0.000000e+00 : f32
    %29 = vector.broadcast %cst_14 : f32 to vector<16x8xf32>
    %30 = arith.maximumf %28, %29 : vector<16x8xf32>
    %31 = vector.extract_strided_slice %30 {offsets = [0, 0], sizes = [2, 8], strides = [1, 1]} : vector<16x8xf32> to vector<2x8xf32>
    %32 = vector.extract_strided_slice %30 {offsets = [2, 0], sizes = [2, 8], strides = [1, 1]} : vector<16x8xf32> to vector<2x8xf32>
    %33 = vector.extract_strided_slice %30 {offsets = [4, 0], sizes = [2, 8], strides = [1, 1]} : vector<16x8xf32> to vector<2x8xf32>
    %34 = vector.extract_strided_slice %30 {offsets = [6, 0], sizes = [2, 8], strides = [1, 1]} : vector<16x8xf32> to vector<2x8xf32>
    %35 = vector.extract_strided_slice %30 {offsets = [8, 0], sizes = [2, 8], strides = [1, 1]} : vector<16x8xf32> to vector<2x8xf32>
    %36 = vector.extract_strided_slice %30 {offsets = [10, 0], sizes = [2, 8], strides = [1, 1]} : vector<16x8xf32> to vector<2x8xf32>
    %37 = vector.extract_strided_slice %30 {offsets = [12, 0], sizes = [2, 8], strides = [1, 1]} : vector<16x8xf32> to vector<2x8xf32>
    %38 = vector.extract_strided_slice %30 {offsets = [14, 0], sizes = [2, 8], strides = [1, 1]} : vector<16x8xf32> to vector<2x8xf32>
    %39 = tpu.concatenate %31, %32, %33, %34, %35, %36, %37, %38 in 1 : vector<2x8xf32>, vector<2x8xf32>, vector<2x8xf32>, vector<2x8xf32>, vector<2x8xf32>, vector<2x8xf32>, vector<2x8xf32>, vector<2x8xf32> -> vector<2x64xf32>
    %c0_15 = arith.constant 0 : index
    %c226 = arith.constant 226 : index
    %40 = vector.load %arg1[%c0_15, %c226] : memref<64x236xf32, #tpu.memory_space<vmem>>, vector<64x5xf32>
    %cst_16 = arith.constant dense<0.000000e+00> : vector<2x5xf32>
    %41 = tpu.matmul %39, %40, %cst_16 {dimension_numbers = #tpu.dot_dimension_numbers<[1], [0], [0], [1], [0, 0, 1, 1], [], []>} : vector<2x64xf32>, vector<64x5xf32>, vector<2x5xf32> -> vector<2x5xf32>
    %c0_17 = arith.constant 0 : index
    %c231 = arith.constant 231 : index
    %42 = vector.load %arg1[%c0_17, %c231] : memref<64x236xf32, #tpu.memory_space<vmem>>, vector<1x5xf32>
    %43 = vector.broadcast %42 : vector<1x5xf32> to vector<2x5xf32>
    %44 = arith.addf %41, %43 : vector<2x5xf32>
    %c0_18 = arith.constant 0 : index
    %c0_19 = arith.constant 0 : index
    %45 = vector.load %arg2[%c0_18, %c0_19] : memref<2x5xf32, #tpu.memory_space<vmem>>, vector<2x5xf32>
    tpu.vector_store %arg2[%c0_18, %c0_19], %44 {strides = array<i32>} : memref<2x5xf32, #tpu.memory_space<vmem>>, vector<2x5xf32>,
    return
  }
}

</mosaic_0001>

<llo_original>
// kernel: tpu_custom_call.1
$region0: #{tpu_custom_call.1}
  #allocation0 [shape = 'u32[]', space=smem, size = 0x4, offset = 0x4, fixed_abs, tag = 'smem constant byte address 0x4 - core index']
  #allocation1 [shape = 'u32[72,128]{1,0:T(1,128)}', space=vmem, size = 0x9000, scoped, tag = 'internal scratch']
  %s0 = inlined_call_operand.hbm [shape: f32[8,16], index: 0, kind: input, shape index: {}]
  %s1 = inlined_call_operand.hbm [shape: f32[64,236], index: 1, kind: input, shape index: {}]
  %s2 = inlined_call_operand.hbm [shape: f32[2,5], index: 2, kind: output, shape index: {}]
  %s3 = sld [smem:[#allocation0]]
  $region26: #{tpu_custom_call.1} parent=0
    _
  %s5 = ssub.s32 1, %s3
  %s6 = scalar_select 0, %s5, %s3
  $region1: #{tpu_custom_call.1} parent=0
    #allocation2 [shape = 'u8[4096]{0}', space=vmem, size = 0x1000, scoped, tag = 'input window, operand 0, single buffered']
    #allocation3 [shape = 's32[1]{0}', space=sflag, size = 0x4, scoped, tag = 'scoped memory for tpu_custom_call.1']
    #allocation4 [shape = 's32[1]{0}', space=sflag, size = 0x4, scoped, tag = 'scoped memory for tpu_custom_call.1']
    #allocation5 [shape = 'u8[65536]{0}', space=vmem, size = 0x10000, scoped, tag = 'input window, operand 1, single buffered']
    #allocation6 [shape = 's32[1]{0}', space=sflag, size = 0x4, scoped, tag = 'scoped memory for tpu_custom_call.1']
    #allocation7 [shape = 'u8[1024]{0}', space=vmem, size = 0x400, scoped, tag = 'output window, operand 0, single buffered']
    %7 = vsyncpa [#allocation3], 0
    %8 = vsyncpa [#allocation6], 0
    %9 = vsyncpa [#allocation4], 0
    // Predicated region
    $region2: #{tpu_custom_call.1} parent=1 // pred_check
      _
    $region3: #{tpu_custom_call.1} parent=1 // pred_check_branch
      %11 = sbr.rel (0) target = $region5
    $region4: #{tpu_custom_call.1} parent=1 // pred_region
      %13 = vsyncadd [#allocation3], 0
      %s15 = sshll.u32 %s0, 4
      %s16 = int_to_ptr.hbm [resolvable:$true] %s15
      %s17 = sshll.u32 [#allocation2], 4
      %s18 = int_to_ptr.vmem [resolvable:$true] %s17
      %20 = dma.hbm_to_vmem [thread:$0]  %s16, 128, %s18, [#allocation3]
    $region5: #{tpu_custom_call.1} parent=1 // pred_fallthru
      _
    // Predicated region
    $region6: #{tpu_custom_call.1} parent=1 // pred_check
      _
    $region7: #{tpu_custom_call.1} parent=1 // pred_check_branch
      %22 = sbr.rel (0) target = $region9
    $region8: #{tpu_custom_call.1} parent=1 // pred_region
      %24 = vsyncadd [#allocation6], 0
      %s25 = sshll.u32 %s1, 4
      %s26 = int_to_ptr.hbm [resolvable:$true] %s25
      %s27 = sshll.u32 [#allocation5], 4
      %s28 = int_to_ptr.vmem [resolvable:$true] %s27
      %33 = dma.hbm_to_vmem [thread:$0]  %s26, 2048, %s28, [#allocation6], 256, 256, 16
    $region9: #{tpu_custom_call.1} parent=1 // pred_fallthru
      _
    // Predicated region
    $region10: #{tpu_custom_call.1} parent=1 // pred_check
      _
    $region11: #{tpu_custom_call.1} parent=1 // pred_check_branch
      %35 = sbr.rel (0) target = $region13
    $region12: #{tpu_custom_call.1} parent=1 // pred_region
      %37 = dma.done [#allocation3], 128
    $region13: #{tpu_custom_call.1} parent=1 // pred_fallthru
      _
    // Predicated region
    $region14: #{tpu_custom_call.1} parent=1 // pred_check
      _
    $region15: #{tpu_custom_call.1} parent=1 // pred_check_branch
      %39 = sbr.rel (0) target = $region17
    $region16: #{tpu_custom_call.1} parent=1 // pred_region
      %41 = dma.done [#allocation6], 2048
    $region17: #{tpu_custom_call.1} parent=1 // pred_fallthru
      _
    %v42 = vld [vmem:[#allocation2] sm:$0xff]
    %44 = vrot.lane.b32.xlu0 %v42, 1
    %v45 = vpop.permute.xlu0 %44
    %vm47 = vcmask 7168
    %v48 = vsel %vm47, 0.0, %v45
    %49 = vrot.lane.b32.xlu0 %v42, 127
    %v50 = vpop.permute.xlu0 %49
    %vm52 = vcmask 121856
    %v53 = vsel %vm52, %v50, 0.0
    %v54 = vld [vmem:[#allocation5] sm:$0xff]
    %v55 = vld [vmem:[#allocation5 + $0x10] sm:$0xff]
    %v56 = vld [vmem:[#allocation5 + $0x20] sm:$0xff]
    %v57 = vld [vmem:[#allocation5 + $0x30] sm:$0xff]
    %v58 = vld [vmem:[#allocation5 + $0x40] sm:$0xff]
    %v59 = vld [vmem:[#allocation5 + $0x50] sm:$0xff]
    %v60 = vld [vmem:[#allocation5 + $0x60] sm:$0xff]
    %v61 = vld [vmem:[#allocation5 + $0x70] sm:$0xff]
    %63 = vset.pattern.permute.xlu0 24
    %64 = vperm.xlu0 %63, %v54
    %v65 = vpop.permute.xlu0 %64
    %68 = vset.pattern.permute.xlu0 24
    %69 = vperm.xlu0 %68, %v55
    %v70 = vpop.permute.xlu0 %69
    %73 = vset.pattern.permute.xlu0 24
    %74 = vperm.xlu0 %73, %v56
    %v75 = vpop.permute.xlu0 %74
    %78 = vset.pattern.permute.xlu0 24
    %79 = vperm.xlu0 %78, %v57
    %v80 = vpop.permute.xlu0 %79
    %83 = vset.pattern.permute.xlu0 24
    %84 = vperm.xlu0 %83, %v58
    %v85 = vpop.permute.xlu0 %84
    %88 = vset.pattern.permute.xlu0 24
    %89 = vperm.xlu0 %88, %v59
    %v90 = vpop.permute.xlu0 %89
    %93 = vset.pattern.permute.xlu0 24
    %94 = vperm.xlu0 %93, %v60
    %v95 = vpop.permute.xlu0 %94
    %98 = vset.pattern.permute.xlu0 24
    %99 = vperm.xlu0 %98, %v61
    %v100 = vpop.permute.xlu0 %99
    %vm102 = vcmask 195584
    %v103 = vsel %vm102, %v54, 0
    %v105 = vsel %vm102, %v55, 0
    %v107 = vsel %vm102, %v56, 0
    %v109 = vsel %vm102, %v57, 0
    %v111 = vsel %vm102, %v58, 0
    %v113 = vsel %vm102, %v59, 0
    %v115 = vsel %vm102, %v60, 0
    %v117 = vsel %vm102, %v61, 0
    %119 = vmatpush.msra.mxu0 0.0
    %120 = vmatpush.msra.mxu0 0.0
    %121 = vmatpush.msra.mxu0 0.0
    %122 = vmatpush.msra.mxu0 0.0
    %123 = vmatpush.msra.mxu0 0.0
    %124 = vmatpush.msra.mxu0 0.0
    %125 = vmatpush.msra.mxu0 0.0
    %126 = vmatpush.msra.mxu0 0.0
    %127 = vmatpush.msra.mxu0 0.0
    %128 = vmatpush.msra.mxu0 0.0
    %129 = vmatpush.msra.mxu0 0.0
    %130 = vmatpush.msra.mxu0 0.0
    %131 = vmatpush.msra.mxu0 0.0
    %132 = vmatpush.msra.mxu0 %v53
    %133 = vmatpush.msra.mxu0 %v42
    %134 = vmatpush.msra.mxu0 %v48
    %135 = vmatmul.f32.gmra.mxu0 %v103
    %v136 = vpop.f32.mrf.mxu0
    %v137 = vadd.f32 %v65, %v136
    %138 = vmatmul.f32.gmra.mxu0 %v105
    %v139 = vpop.f32.mrf.mxu0
    %v140 = vadd.f32 %v70, %v139
    %141 = vmatmul.f32.gmra.mxu0 %v107
    %v142 = vpop.f32.mrf.mxu0
    %v143 = vadd.f32 %v75, %v142
    %144 = vmatmul.f32.gmra.mxu0 %v109
    %v145 = vpop.f32.mrf.mxu0
    %v146 = vadd.f32 %v80, %v145
    %147 = vmatmul.f32.gmra.mxu0 %v111
    %v148 = vpop.f32.mrf.mxu0
    %v149 = vadd.f32 %v85, %v148
    %150 = vmatmul.f32.gmra.mxu0 %v113
    %v151 = vpop.f32.mrf.mxu0
    %v152 = vadd.f32 %v90, %v151
    %153 = vmatmul.f32.gmra.mxu0 %v115
    %v154 = vpop.f32.mrf.mxu0
    %v155 = vadd.f32 %v95, %v154
    %156 = vmatmul.f32.gmra.mxu0 %v117
    %v157 = vpop.f32.mrf.mxu0
    %v158 = vadd.f32 %v100, %v157
    %159 = vdwg.mxu0
    %v160 = vmax.f32 %v137, 0.0
    %v161 = vmax.f32 %v140, 0.0
    %v162 = vmax.f32 %v143, 0.0
    %v163 = vmax.f32 %v146, 0.0
    %v164 = vmax.f32 %v149, 0.0
    %v165 = vmax.f32 %v152, 0.0
    %v166 = vmax.f32 %v155, 0.0
    %v167 = vmax.f32 %v158, 0.0
    %v168 = vld [vmem:[#allocation5] sm:$0xff]
    %v169 = vld [vmem:[#allocation5 + $0x10] sm:$0xff]
    %172 = vrot.lane.b32.xlu0 %v168, 103
    %v173 = vpop.permute.xlu0 %172
    %174 = vrot.lane.b32.xlu0 %v169, 103
    %v175 = vpop.permute.xlu0 %174
    %vm178 = vcmask 130048
    %v180 = vsel %vm178, %v160, 0
    %v183 = vsel %vm178, %v161, 0
    %v186 = vsel %vm178, %v162, 0
    %v189 = vsel %vm178, %v163, 0
    %v192 = vsel %vm178, %v164, 0
    %v195 = vsel %vm178, %v165, 0
    %v198 = vsel %vm178, %v166, 0
    %v201 = vsel %vm178, %v167, 0
    %203 = vmatpush.msra.mxu0 0.0
    %204 = vmatpush.msra.mxu0 0.0
    %205 = vmatpush.msra.mxu0 0.0
    %206 = vmatpush.msra.mxu0 0.0
    %207 = vmatpush.msra.mxu0 0.0
    %208 = vmatpush.msra.mxu0 0.0
    %209 = vmatpush.msra.mxu0 0.0
    %210 = vmatpush.msra.mxu0 0.0
    %211 = vmatpush.msra.mxu0 0.0
    %212 = vmatpush.msra.mxu0 0.0
    %213 = vmatpush.msra.mxu0 0.0
    %214 = vmatpush.msra.mxu0 0.0
    %215 = vmatpush.msra.mxu0 0.0
    %216 = vmatpush.msra.mxu0 0.0
    %217 = vmatpush.msra.mxu0 %v175
    %218 = vmatpush.msra.mxu0 %v173
    %219 = vmatmul.f32.gmra.mxu0 %v180
    %v220 = vpop.f32.mrf.mxu0
    %v221 = vadd.f32 0.0, %v220
    %222 = vmatmul.f32.gmra.mxu0 %v183
    %v223 = vpop.f32.mrf.mxu0
    %v224 = vadd.f32 0.0, %v223
    %225 = vmatmul.f32.gmra.mxu0 %v186
    %v226 = vpop.f32.mrf.mxu0
    %v227 = vadd.f32 0.0, %v226
    %228 = vmatmul.f32.gmra.mxu0 %v189
    %v229 = vpop.f32.mrf.mxu0
    %v230 = vadd.f32 0.0, %v229
    %231 = vmatmul.f32.gmra.mxu0 %v192
    %v232 = vpop.f32.mrf.mxu0
    %v233 = vadd.f32 0.0, %v232
    %234 = vmatmul.f32.gmra.mxu0 %v195
    %v235 = vpop.f32.mrf.mxu0
    %v236 = vadd.f32 0.0, %v235
    %237 = vmatmul.f32.gmra.mxu0 %v198
    %v238 = vpop.f32.mrf.mxu0
    %v239 = vadd.f32 0.0, %v238
    %240 = vmatmul.f32.gmra.mxu0 %v201
    %v241 = vpop.f32.mrf.mxu0
    %v242 = vadd.f32 0.0, %v241
    %243 = vdwg.mxu0
    %252 = vrot.lane.b32.xlu0 %v221, 1
    %v253 = vpop.permute.xlu0 %252
    %254 = vrot.lane.b32.xlu0 %v224, 1
    %v255 = vpop.permute.xlu0 %254
    %256 = vrot.lane.b32.xlu0 %v227, 1
    %v257 = vpop.permute.xlu0 %256
    %258 = vrot.lane.b32.xlu0 %v230, 1
    %v259 = vpop.permute.xlu0 %258
    %260 = vrot.lane.b32.xlu0 %v233, 1
    %v261 = vpop.permute.xlu0 %260
    %262 = vrot.lane.b32.xlu0 %v236, 1
    %v263 = vpop.permute.xlu0 %262
    %264 = vrot.lane.b32.xlu0 %v239, 1
    %v265 = vpop.permute.xlu0 %264
    %266 = vrot.lane.b32.xlu0 %v242, 1
    %v267 = vpop.permute.xlu0 %266
    %v276 = vsel %vm47, 0.0, %v253
    %v277 = vsel %vm47, 0.0, %v255
    %v278 = vsel %vm47, 0.0, %v257
    %v279 = vsel %vm47, 0.0, %v259
    %v280 = vsel %vm47, 0.0, %v261
    %v281 = vsel %vm47, 0.0, %v263
    %v282 = vsel %vm47, 0.0, %v265
    %v283 = vsel %vm47, 0.0, %v267
    %284 = vrot.lane.b32.xlu0 %v221, 127
    %v285 = vpop.permute.xlu0 %284
    %286 = vrot.lane.b32.xlu0 %v224, 127
    %v287 = vpop.permute.xlu0 %286
    %288 = vrot.lane.b32.xlu0 %v227, 127
    %v289 = vpop.permute.xlu0 %288
    %290 = vrot.lane.b32.xlu0 %v230, 127
    %v291 = vpop.permute.xlu0 %290
    %292 = vrot.lane.b32.xlu0 %v233, 127
    %v293 = vpop.permute.xlu0 %292
    %294 = vrot.lane.b32.xlu0 %v236, 127
    %v295 = vpop.permute.xlu0 %294
    %296 = vrot.lane.b32.xlu0 %v239, 127
    %v297 = vpop.permute.xlu0 %296
    %298 = vrot.lane.b32.xlu0 %v242, 127
    %v299 = vpop.permute.xlu0 %298
    %vm308 = vcmask 56320
    %v309 = vsel %vm308, %v285, 0.0
    %v310 = vsel %vm308, %v287, 0.0
    %v311 = vsel %vm308, %v289, 0.0
    %v312 = vsel %vm308, %v291, 0.0
    %v313 = vsel %vm308, %v293, 0.0
    %v314 = vsel %vm308, %v295, 0.0
    %v315 = vsel %vm308, %v297, 0.0
    %v316 = vsel %vm308, %v299, 0.0
    %v317 = vld [vmem:[#allocation5] sm:$0xff]
    %v318 = vld [vmem:[#allocation5 + $0x8] sm:$0xff]
    %v319 = vld [vmem:[#allocation5 + $0x10] sm:$0xff]
    %v320 = vld [vmem:[#allocation5 + $0x18] sm:$0xff]
    %322 = vset.pattern.permute.xlu0 97
    %323 = vperm.xlu0 %322, %v318
    %v324 = vpop.permute.xlu0 %323
    %327 = vset.pattern.permute.xlu0 97
    %328 = vperm.xlu0 %327, %v320
    %v329 = vpop.permute.xlu0 %328
    %333 = vrot.lane.b32.xlu0 %v317, 95
    %v334 = vpop.permute.xlu0 %333
    %335 = vrot.lane.b32.xlu0 %v318, 95
    %v336 = vpop.permute.xlu0 %335
    %337 = vrot.lane.b32.xlu0 %v319, 95
    %v338 = vpop.permute.xlu0 %337
    %339 = vrot.lane.b32.xlu0 %v320, 95
    %v340 = vpop.permute.xlu0 %339
    %vm341 = vcmask 777216
    %v342 = vsel %vm341, %v334, %v336
    %v343 = vsel %vm341, %v338, %v340
    %vm346 = vcmask 523264
    %v347 = vsel %vm346, %v336, 0
    %v349 = vsel %vm346, %v340, 0
    %351 = vmatpush.msra.mxu0 %v242
    %352 = vmatpush.msra.mxu0 %v239
    %353 = vmatpush.msra.mxu0 %v236
    %354 = vmatpush.msra.mxu0 %v233
    %355 = vmatpush.msra.mxu0 %v230
    %356 = vmatpush.msra.mxu0 %v227
    %357 = vmatpush.msra.mxu0 %v224
    %358 = vmatpush.msra.mxu0 %v221
    %359 = vmatpush.msra.mxu0 %v283
    %360 = vmatpush.msra.mxu0 %v282
    %361 = vmatpush.msra.mxu0 %v281
    %362 = vmatpush.msra.mxu0 %v280
    %363 = vmatpush.msra.mxu0 %v279
    %364 = vmatpush.msra.mxu0 %v278
    %365 = vmatpush.msra.mxu0 %v277
    %366 = vmatpush.msra.mxu0 %v276
    %367 = vmatmul.f32.gmra.mxu0 %v342
    %v368 = vpop.f32.mrf.mxu0
    %v369 = vadd.f32 %v324, %v368
    %370 = vmatmul.f32.gmra.mxu0 %v343
    %v371 = vpop.f32.mrf.mxu0
    %v372 = vadd.f32 %v329, %v371
    %373 = vdwg.mxu0
    %374 = vmatpush.msra.mxu0 0.0
    %375 = vmatpush.msra.mxu0 0.0
    %376 = vmatpush.msra.mxu0 0.0
    %377 = vmatpush.msra.mxu0 0.0
    %378 = vmatpush.msra.mxu0 0.0
    %379 = vmatpush.msra.mxu0 0.0
    %380 = vmatpush.msra.mxu0 0.0
    %381 = vmatpush.msra.mxu0 0.0
    %382 = vmatpush.msra.mxu0 %v316
    %383 = vmatpush.msra.mxu0 %v315
    %384 = vmatpush.msra.mxu0 %v314
    %385 = vmatpush.msra.mxu0 %v313
    %386 = vmatpush.msra.mxu0 %v312
    %387 = vmatpush.msra.mxu0 %v311
    %388 = vmatpush.msra.mxu0 %v310
    %389 = vmatpush.msra.mxu0 %v309
    %390 = vmatmul.f32.gmra.mxu0 %v347
    %v391 = vpop.f32.mrf.mxu0
    %v392 = vadd.f32 %v369, %v391
    %393 = vmatmul.f32.gmra.mxu0 %v349
    %v394 = vpop.f32.mrf.mxu0
    %v395 = vadd.f32 %v372, %v394
    %396 = vdwg.mxu0
    %v397 = vmax.f32 %v392, 0.0
    %v398 = vmax.f32 %v395, 0.0
    %v400 = vrot.slane %v397, 2
    %401 = vrot.lane.b32.xlu0 %v400, 8
    %v402 = vpop.permute.xlu0 %401
    %v404 = vrot.slane %v397, 4
    %405 = vrot.lane.b32.xlu0 %v404, 16
    %v406 = vpop.permute.xlu0 %405
    %v408 = vrot.slane %v397, 6
    %409 = vrot.lane.b32.xlu0 %v408, 24
    %v410 = vpop.permute.xlu0 %409
    %413 = vrot.lane.b32.xlu0 %v398, 32
    %v414 = vpop.permute.xlu0 %413
    %v416 = vrot.slane %v398, 2
    %417 = vrot.lane.b32.xlu0 %v416, 40
    %v418 = vpop.permute.xlu0 %417
    %v420 = vrot.slane %v398, 4
    %421 = vrot.lane.b32.xlu0 %v420, 48
    %v422 = vpop.permute.xlu0 %421
    %v424 = vrot.slane %v398, 6
    %425 = vrot.lane.b32.xlu0 %v424, 56
    %v426 = vpop.permute.xlu0 %425
    %vm428 = vcmask 64512
    %v429 = vsel %vm428, %v397, %v402
    %v430 = vsel %vm178, %v429, %v406
    %v431 = vsel %vm102, %v430, %v410
    %vm432 = vcmask 261120
    %v433 = vsel %vm432, %v431, %v414
    %vm434 = vcmask 326656
    %v435 = vsel %vm434, %v433, %v418
    %vm436 = vcmask 392192
    %v437 = vsel %vm436, %v435, %v422
    %vm438 = vcmask 457728
    %v439 = vsel %vm438, %v437, %v426
    %v440 = vld [vmem:[#allocation5 + $0x8] sm:$0xff]
    %v441 = vld [vmem:[#allocation5 + $0x18] sm:$0xff]
    %v442 = vld [vmem:[#allocation5 + $0x28] sm:$0xff]
    %v443 = vld [vmem:[#allocation5 + $0x38] sm:$0xff]
    %v444 = vld [vmem:[#allocation5 + $0x48] sm:$0xff]
    %v445 = vld [vmem:[#allocation5 + $0x58] sm:$0xff]
    %v446 = vld [vmem:[#allocation5 + $0x68] sm:$0xff]
    %v447 = vld [vmem:[#allocation5 + $0x78] sm:$0xff]
    %v448 = vld [vmem:[#allocation5 + $0x8] ss:$0 sm:$0xff]
    %457 = vrot.lane.b32.xlu0 %v440, 30
    %v458 = vpop.permute.xlu0 %457
    %459 = vrot.lane.b32.xlu0 %v441, 30
    %v460 = vpop.permute.xlu0 %459
    %461 = vrot.lane.b32.xlu0 %v442, 30
    %v462 = vpop.permute.xlu0 %461
    %463 = vrot.lane.b32.xlu0 %v443, 30
    %v464 = vpop.permute.xlu0 %463
    %465 = vrot.lane.b32.xlu0 %v444, 30
    %v466 = vpop.permute.xlu0 %465
    %467 = vrot.lane.b32.xlu0 %v445, 30
    %v468 = vpop.permute.xlu0 %467
    %469 = vrot.lane.b32.xlu0 %v446, 30
    %v470 = vpop.permute.xlu0 %469
    %471 = vrot.lane.b32.xlu0 %v447, 30
    %v472 = vpop.permute.xlu0 %471
    %482 = vrot.lane.b32.xlu0 %v448, 25
    %v483 = vpop.permute.xlu0 %482
    %v486 = vsel %vm346, %v439, 0
    %488 = vmatpush.msra.mxu0 0.0
    %489 = vmatpush.msra.mxu0 0.0
    %490 = vmatpush.msra.mxu0 0.0
    %491 = vmatpush.msra.mxu0 0.0
    %492 = vmatpush.msra.mxu0 0.0
    %493 = vmatpush.msra.mxu0 0.0
    %494 = vmatpush.msra.mxu0 0.0
    %495 = vmatpush.msra.mxu0 0.0
    %496 = vmatpush.msra.mxu0 %v472
    %497 = vmatpush.msra.mxu0 %v470
    %498 = vmatpush.msra.mxu0 %v468
    %499 = vmatpush.msra.mxu0 %v466
    %500 = vmatpush.msra.mxu0 %v464
    %501 = vmatpush.msra.mxu0 %v462
    %502 = vmatpush.msra.mxu0 %v460
    %503 = vmatpush.msra.mxu0 %v458
    %504 = vmatmul.f32.gmra.mxu0 %v486
    %v505 = vpop.f32.mrf.mxu0
    %v506 = vadd.f32 %v483, %v505
    %507 = vdwg.mxu0
    %vm508 = vcmask 33792
    %509 = vst.msk [vmem:[#allocation7] sm:$0x3] %vm508, %v506
    // Predicated region
    $region18: #{tpu_custom_call.1} parent=1 // pred_check
      _
    $region19: #{tpu_custom_call.1} parent=1 // pred_check_branch
      %511 = sbr.rel (0) target = $region21
    $region20: #{tpu_custom_call.1} parent=1 // pred_region
      %513 = vsyncadd [#allocation4], 0
      %s515 = sshll.u32 [#allocation7], 4
      %s516 = int_to_ptr.vmem [resolvable:$true] %s515
      %s517 = sshll.u32 %s2, 4
      %s518 = int_to_ptr.hbm [resolvable:$true] %s517
      %520 = dma.vmem_to_hbm [thread:$0]  %s516, 32, %s518, [#allocation4]
    $region21: #{tpu_custom_call.1} parent=1 // pred_fallthru
      _
    // Predicated region
    $region22: #{tpu_custom_call.1} parent=1 // pred_check
      _
    $region23: #{tpu_custom_call.1} parent=1 // pred_check_branch
      %522 = sbr.rel (0) target = $region25
    $region24: #{tpu_custom_call.1} parent=1 // pred_region
      %524 = dma.done [#allocation4], 32
    $region25: #{tpu_custom_call.1} parent=1 // pred_fallthru
      _
    %525 = vsyncpa [#allocation3], 1
    %526 = vsyncpa [#allocation6], 1
    %527 = vsyncpa [#allocation4], 1

</llo_original>
